<compile_context>
chip_gen: v6e
topology: v6e:2x2x1
jax: 0.10.0
libtpu: 0.0.40
codegen_flags: <defaults>
</compile_context>

<pallas_src>
import functools

import jax
import jax.numpy as jnp
from jax.experimental import pallas as pl
from jax.experimental.pallas import tpu as pltpu

num_organ = 3
NUM_CLASSES = num_organ + 1
EPS = 1e-5


def _dice_reduce_kernel(pred_ref, tgt_ref, out_ref, *, r_total, r_block,
                        steps_per_chunk, needs_mask):
    """Accumulate lane-resident per-class partial sums over spatial row-tiles.

    pred_ref : (C, Rb, 128) input dtype — one batch, all classes, one row-tile
    tgt_ref  : (Rb, 128)    int32       — labels for the same row-tile
    out_ref  : (3, C, 128)  float32     — [sum(pred*onehot), sum(pred^2),
                                           sum(onehot)] per-lane partials,
                                           resident across the innermost
                                           ("arbitrary") spatial grid axis.
    """
    p = pl.program_id(1)          # parallel spatial-chunk index
    s = pl.program_id(2)          # row-tile index within the chunk

    @pl.when(s == 0)
    def _init():
        out_ref[...] = jnp.zeros_like(out_ref)

    pred = pred_ref[...].astype(jnp.float32)          # (C, Rb, 128) f32
    tgt = tgt_ref[...]                                # (Rb, 128) int32
    C, Rb, L = pred.shape

    if needs_mask:
        # The last row-tile can extend past the real row count; Pallas pads the
        # block with unspecified data, so mask by global row index (static path:
        # compiled in only when the tiling actually has a partial tile).
        tile_idx = p * steps_per_chunk + s
        rows = tile_idx * r_block + jax.lax.broadcasted_iota(
            jnp.int32, (Rb, L), 0)
        valid = rows < r_total
        pred = jnp.where(valid[None, :, :], pred, 0.0)
        tgt = jnp.where(valid, tgt, -1)

    cls = jax.lax.broadcasted_iota(jnp.int32, (C, Rb, L), 0)
    onehot = tgt[None, :, :] == cls                   # (C, Rb, 128) bool

    out_ref[0] += jnp.sum(jnp.where(onehot, pred, 0.0), axis=1)   # sum(pred*onehot)
    out_ref[1] += jnp.sum(pred * pred, axis=1)                    # sum(pred^2)
    out_ref[2] += jnp.sum(jnp.where(onehot, 1.0, 0.0), axis=1)    # sum(onehot)


def dice_loss(pred, target, *, row_block=1024, max_parallel_chunks=8):
    """Pallas implementation of DiceLoss.forward.

    pred   : (B, C, D, H, W) float (f32 or bf16), C == num_organ + 1
    target : (B, D, H, W) integer labels in [0, num_organ]
    returns: scalar float32 loss

    row_block = number of 128-lane rows per grid step (multiple of 8 when it
    tiles). The default 1024 (~2.5 MiB/step for f32 pred, ~5 MiB double
    buffered) is safe on v5e/v6e/v7x; raise it (and vmem_limit_bytes) on v6e
    if you want to chase the last few % of roofline.
    """
    B, C, D, H, W = pred.shape
    assert C == NUM_CLASSES
    S = D * H * W

    # Flatten spatial dims and retile as (rows, 128): spatial occupies the
    # lane-dense last-two block dims. pred keeps its native dtype (no f32
    # upcast copy in HBM); the kernel upcasts per tile.
    S128 = -(-S // 128) * 128
    pred_f = pred.reshape(B, C, S)
    tgt_i = target.reshape(B, S).astype(jnp.int32)
    if S128 != S:
        pad = S128 - S
        pred_f = jnp.pad(pred_f, ((0, 0), (0, 0), (0, pad)))
        # -1 never matches any class index, so padded lanes contribute nothing.
        tgt_i = jnp.pad(tgt_i, ((0, 0), (0, pad)), constant_values=-1)
    R = S128 // 128
    pred_f = pred_f.reshape(B, C, R, 128)
    tgt_i = tgt_i.reshape(B, R, 128)

    # Row-tile size.
    if R <= row_block:
        r_block = R                      # single tile == full dim (always legal)
        num_tiles = 1
    else:
        assert row_block % 8 == 0, "row_block must be a multiple of 8"
        r_block = row_block
        num_tiles = -(-R // r_block)
    needs_mask = (num_tiles * r_block != R)

    # Parallel spatial chunks (feeds both v7x TensorCores when B is small).
    # Only use a chunk count that divides the tile count, else fall back to 1.
    P = 1
    for cand in (8, 4, 2):
        if cand <= max_parallel_chunks and cand <= num_tiles and num_tiles % cand == 0:
            P = cand
            break
    steps = num_tiles // P

    kernel = functools.partial(
        _dice_reduce_kernel,
        r_total=R, r_block=r_block, steps_per_chunk=steps, needs_mask=needs_mask)

    partials = pl.pallas_call(
        kernel,
        out_shape=jax.ShapeDtypeStruct((B, P, 3, C, 128), jnp.float32),
        grid_spec=pltpu.PrefetchScalarGridSpec(
            num_scalar_prefetch=0,
            grid=(B, P, steps),
            in_specs=[
                pl.BlockSpec((None, C, r_block, 128),
                             lambda b, p, s: (b, 0, p * steps + s, 0)),
                pl.BlockSpec((None, r_block, 128),
                             lambda b, p, s: (b, p * steps + s, 0)),
            ],
            out_specs=pl.BlockSpec((None, None, 3, C, 128),
                                   lambda b, p, s: (b, p, 0, 0, 0)),
        ),
        compiler_params=pltpu.CompilerParams(
            dimension_semantics=("parallel", "parallel", "arbitrary"),
            vmem_limit_bytes=32 * 1024 * 1024),
    )(pred_f, tgt_i)

    # Tiny epilogue: cross-lane + cross-chunk reduce, then the dice combine
    # (exactly mirrors the PyTorch class loop, then /(num_organ+1) and mean).
    sums = jnp.sum(partials, axis=(1, 4))                      # (B, 3, C)
    inter, psq, tsum = sums[:, 0, :], sums[:, 1, :], sums[:, 2, :]
    dice_per_class = 2.0 * inter / (psq + tsum + EPS)          # (B, C)
    dice = jnp.sum(dice_per_class, axis=1) / NUM_CLASSES       # (B,)
    return jnp.mean(1.0 - dice)


def dice_loss_reference(pred, target):
    """Pure-JAX reference mirroring the PyTorch module (for validation)."""
    B = pred.shape[0]
    pred = pred.astype(jnp.float32)
    dice = jnp.zeros((B,), jnp.float32)
    for organ_index in range(NUM_CLASSES):
        onehot = (target == organ_index).astype(jnp.float32)
        p = pred[:, organ_index]
        num = 2.0 * jnp.sum(p * onehot, axis=(1, 2, 3))
        den = (jnp.sum(p * p, axis=(1, 2, 3))
               + jnp.sum(onehot * onehot, axis=(1, 2, 3)) + EPS)
        dice = dice + num / den
    dice = dice / NUM_CLASSES
    return jnp.mean(1.0 - dice)


if __name__ == "__main__":
    # Test 1: small, 128-aligned shapes (single spatial tile per batch).
    B, D, H, W = 2, 4, 8, 16
    kp, kt = jax.random.split(jax.random.PRNGKey(0))
    pred = jax.random.normal(kp, (B, NUM_CLASSES, D, H, W), dtype=jnp.float32)
    target = jax.random.randint(kt, (B, D, H, W), 0, NUM_CLASSES, dtype=jnp.int32)
    out = jax.block_until_ready(dice_loss(pred, target))
    ref = jax.block_until_ready(dice_loss_reference(pred, target))
    assert jnp.allclose(out, ref, rtol=1e-5, atol=1e-5), (out, ref)

    # Test 2: ragged spatial size exercising the lane pad, the partial
    # row-tile mask path, and the parallel-chunk axis (row_block=8 -> 2 tiles).
    B2, D2, H2, W2 = 2, 3, 11, 32   # S = 1056 -> padded to 1152 = 9 rows of 128
    kp2, kt2 = jax.random.split(jax.random.PRNGKey(1))
    pred2 = jax.random.normal(kp2, (B2, NUM_CLASSES, D2, H2, W2), dtype=jnp.float32)
    target2 = jax.random.randint(kt2, (B2, D2, H2, W2), 0, NUM_CLASSES,
                                 dtype=jnp.int32)
    out2 = jax.block_until_ready(dice_loss(pred2, target2, row_block=8))
    ref2 = jax.block_until_ready(dice_loss_reference(pred2, target2))
    assert jnp.allclose(out2, ref2, rtol=1e-5, atol=1e-5), (out2, ref2)

    print("KERNEL_OK")
</pallas_src>

<mosaic_0001>
module attributes {stable_mosaic.version = 11 : i64} {
  func.func @_dice_reduce_kernel(%arg0: i32, %arg1: i32, %arg2: i32, %arg3: memref<1x4x4x128xf32, #tpu.memory_space<vmem>>, %arg4: memref<1x4x128xi32, #tpu.memory_space<vmem>>, %arg5: memref<1x1x3x4x128xf32, #tpu.memory_space<vmem>>) attributes {dimension_semantics = [#tpu.dimension_semantics<parallel>, #tpu.dimension_semantics<parallel>, #tpu.dimension_semantics<arbitrary>], iteration_bounds = array<i64: 2, 1, 1>, scalar_prefetch = 0 : i64, scratch_operands = 0 : i64, tpu.core_type = #tpu.core_type<tc>, window_params = [{transform_indices = @transform_0, window_bounds = array<i64: 1, 4, 4, 128>}, {transform_indices = @transform_1, window_bounds = array<i64: 1, 4, 128>}, {transform_indices = @transform_2, window_bounds = array<i64: 1, 1, 3, 4, 128>}]} {
    %c0_i32 = arith.constant 0 : i32
    %0 = arith.cmpi eq, %arg2, %c0_i32 : i32
    %1 = arith.extui %0 : i1 to i32
    %c0_i32_0 = arith.constant 0 : i32
    %2 = arith.cmpi ne, %1, %c0_i32_0 : i32
    scf.if %2 {
      %cst_40 = arith.constant 0.000000e+00 : f32
      %38 = vector.broadcast %cst_40 : f32 to vector<3x4x128xf32>
      %c0_41 = arith.constant 0 : index
      %c0_42 = arith.constant 0 : index
      %c0_43 = arith.constant 0 : index
      %c0_44 = arith.constant 0 : index
      %c0_45 = arith.constant 0 : index
      %39 = vector.load %arg5[%c0_41, %c0_42, %c0_43, %c0_44, %c0_45] : memref<1x1x3x4x128xf32, #tpu.memory_space<vmem>>, vector<1x1x3x4x128xf32>
      %40 = vector.shape_cast %39 : vector<1x1x3x4x128xf32> to vector<3x4x128xf32>
      %41 = vector.shape_cast %38 : vector<3x4x128xf32> to vector<1x1x3x4x128xf32>
      tpu.vector_store %arg5[%c0_41, %c0_42, %c0_43, %c0_44, %c0_45], %41 {strides = array<i32>} : memref<1x1x3x4x128xf32, #tpu.memory_space<vmem>>, vector<1x1x3x4x128xf32>,
    } else {
    }
    %c0 = arith.constant 0 : index
    %c0_1 = arith.constant 0 : index
    %c0_2 = arith.constant 0 : index
    %c0_3 = arith.constant 0 : index
    %3 = vector.load %arg3[%c0, %c0_1, %c0_2, %c0_3] : memref<1x4x4x128xf32, #tpu.memory_space<vmem>>, vector<1x4x4x128xf32>
    %4 = vector.shape_cast %3 : vector<1x4x4x128xf32> to vector<4x4x128xf32>
    %c0_4 = arith.constant 0 : index
    %c0_5 = arith.constant 0 : index
    %c0_6 = arith.constant 0 : index
    %5 = vector.load %arg4[%c0_4, %c0_5, %c0_6] : memref<1x4x128xi32, #tpu.memory_space<vmem>>, vector<1x4x128xi32>
    %6 = vector.shape_cast %5 : vector<1x4x128xi32> to vector<4x128xi32>
    %7 = tpu.iota {dimensions = array<i32: 0>} : vector<4x4x128xi32>
    %8 = vector.shape_cast %6 : vector<4x128xi32> to vector<1x4x128xi32>
    %9 = vector.broadcast %8 : vector<1x4x128xi32> to vector<4x4x128xi32>
    %10 = arith.cmpi eq, %9, %7 : vector<4x4x128xi32>
    %c0_7 = arith.constant 0 : index
    %c0_8 = arith.constant 0 : index
    %c0_9 = arith.constant 0 : index
    %c0_10 = arith.constant 0 : index
    %c0_11 = arith.constant 0 : index
    %11 = vector.load %arg5[%c0_7, %c0_8, %c0_9, %c0_10, %c0_11] : memref<1x1x3x4x128xf32, #tpu.memory_space<vmem>>, vector<1x1x1x4x128xf32>
    %12 = vector.shape_cast %11 : vector<1x1x1x4x128xf32> to vector<4x128xf32>
    %cst = arith.constant 0.000000e+00 : f32
    %13 = vector.broadcast %cst : f32 to vector<4x4x128xf32>
    %14 = arith.select %10, %4, %13 : vector<4x4x128xi1>, vector<4x4x128xf32>
    %cst_12 = arith.constant dense<0.000000e+00> : vector<4x128xf32>
    %15 = vector.multi_reduction <add>, %14, %cst_12 [1] : vector<4x4x128xf32> to vector<4x128xf32>
    %16 = arith.addf %12, %15 : vector<4x128xf32>
    %c0_13 = arith.constant 0 : index
    %c0_14 = arith.constant 0 : index
    %c0_15 = arith.constant 0 : index
    %c0_16 = arith.constant 0 : index
    %c0_17 = arith.constant 0 : index
    %17 = vector.load %arg5[%c0_13, %c0_14, %c0_15, %c0_16, %c0_17] : memref<1x1x3x4x128xf32, #tpu.memory_space<vmem>>, vector<1x1x1x4x128xf32>
    %18 = vector.shape_cast %17 : vector<1x1x1x4x128xf32> to vector<4x128xf32>
    %19 = vector.shape_cast %16 : vector<4x128xf32> to vector<1x1x1x4x128xf32>
    tpu.vector_store %arg5[%c0_13, %c0_14, %c0_15, %c0_16, %c0_17], %19 {strides = array<i32>} : memref<1x1x3x4x128xf32, #tpu.memory_space<vmem>>, vector<1x1x1x4x128xf32>,
    %c0_18 = arith.constant 0 : index
    %c0_19 = arith.constant 0 : index
    %c1 = arith.constant 1 : index
    %c0_20 = arith.constant 0 : index
    %c0_21 = arith.constant 0 : index
    %20 = vector.load %arg5[%c0_18, %c0_19, %c1, %c0_20, %c0_21] : memref<1x1x3x4x128xf32, #tpu.memory_space<vmem>>, vector<1x1x1x4x128xf32>
    %21 = vector.shape_cast %20 : vector<1x1x1x4x128xf32> to vector<4x128xf32>
    %22 = arith.mulf %4, %4 : vector<4x4x128xf32>
    %cst_22 = arith.constant dense<0.000000e+00> : vector<4x128xf32>
    %23 = vector.multi_reduction <add>, %22, %cst_22 [1] : vector<4x4x128xf32> to vector<4x128xf32>
    %24 = arith.addf %21, %23 : vector<4x128xf32>
    %c0_23 = arith.constant 0 : index
    %c0_24 = arith.constant 0 : index
    %c1_25 = arith.constant 1 : index
    %c0_26 = arith.constant 0 : index
    %c0_27 = arith.constant 0 : index
    %25 = vector.load %arg5[%c0_23, %c0_24, %c1_25, %c0_26, %c0_27] : memref<1x1x3x4x128xf32, #tpu.memory_space<vmem>>, vector<1x1x1x4x128xf32>
    %26 = vector.shape_cast %25 : vector<1x1x1x4x128xf32> to vector<4x128xf32>
    %27 = vector.shape_cast %24 : vector<4x128xf32> to vector<1x1x1x4x128xf32>
    tpu.vector_store %arg5[%c0_23, %c0_24, %c1_25, %c0_26, %c0_27], %27 {strides = array<i32>} : memref<1x1x3x4x128xf32, #tpu.memory_space<vmem>>, vector<1x1x1x4x128xf32>,
    %c0_28 = arith.constant 0 : index
    %c0_29 = arith.constant 0 : index
    %c2 = arith.constant 2 : index
    %c0_30 = arith.constant 0 : index
    %c0_31 = arith.constant 0 : index
    %28 = vector.load %arg5[%c0_28, %c0_29, %c2, %c0_30, %c0_31] : memref<1x1x3x4x128xf32, #tpu.memory_space<vmem>>, vector<1x1x1x4x128xf32>
    %29 = vector.shape_cast %28 : vector<1x1x1x4x128xf32> to vector<4x128xf32>
    %cst_32 = arith.constant 1.000000e+00 : f32
    %cst_33 = arith.constant 0.000000e+00 : f32
    %30 = vector.broadcast %cst_32 : f32 to vector<4x4x128xf32>
    %31 = vector.broadcast %cst_33 : f32 to vector<4x4x128xf32>
    %32 = arith.select %10, %30, %31 : vector<4x4x128xi1>, vector<4x4x128xf32>
    %cst_34 = arith.constant dense<0.000000e+00> : vector<4x128xf32>
    %33 = vector.multi_reduction <add>, %32, %cst_34 [1] : vector<4x4x128xf32> to vector<4x128xf32>
    %34 = arith.addf %29, %33 : vector<4x128xf32>
    %c0_35 = arith.constant 0 : index
    %c0_36 = arith.constant 0 : index
    %c2_37 = arith.constant 2 : index
    %c0_38 = arith.constant 0 : index
    %c0_39 = arith.constant 0 : index
    %35 = vector.load %arg5[%c0_35, %c0_36, %c2_37, %c0_38, %c0_39] : memref<1x1x3x4x128xf32, #tpu.memory_space<vmem>>, vector<1x1x1x4x128xf32>
    %36 = vector.shape_cast %35 : vector<1x1x1x4x128xf32> to vector<4x128xf32>
    %37 = vector.shape_cast %34 : vector<4x128xf32> to vector<1x1x1x4x128xf32>
    tpu.vector_store %arg5[%c0_35, %c0_36, %c2_37, %c0_38, %c0_39], %37 {strides = array<i32>} : memref<1x1x3x4x128xf32, #tpu.memory_space<vmem>>, vector<1x1x1x4x128xf32>,
    return
  }
  func.func @transform_0(%arg0: i32, %arg1: i32, %arg2: i32) -> (i32, i32, i32, i32) {
    %c1_i32 = arith.constant 1 : i32
    %0 = arith.muli %arg1, %c1_i32 : i32
    %1 = arith.addi %0, %arg2 : i32
    %c0_i32 = arith.constant 0 : i32
    %c0_i32_0 = arith.constant 0 : i32
    %c0_i32_1 = arith.constant 0 : i32
    return %arg0, %c0_i32, %1, %c0_i32_0 : i32, i32, i32, i32
  }
  func.func @transform_1(%arg0: i32, %arg1: i32, %arg2: i32) -> (i32, i32, i32) {
    %c1_i32 = arith.constant 1 : i32
    %0 = arith.muli %arg1, %c1_i32 : i32
    %1 = arith.addi %0, %arg2 : i32
    %c0_i32 = arith.constant 0 : i32
    %c0_i32_0 = arith.constant 0 : i32
    return %arg0, %1, %c0_i32 : i32, i32, i32
  }
  func.func @transform_2(%arg0: i32, %arg1: i32, %arg2: i32) -> (i32, i32, i32, i32, i32) {
    %c0_i32 = arith.constant 0 : i32
    %c0_i32_0 = arith.constant 0 : i32
    %c0_i32_1 = arith.constant 0 : i32
    %c0_i32_2 = arith.constant 0 : i32
    return %arg0, %arg1, %c0_i32, %c0_i32_0, %c0_i32_1 : i32, i32, i32, i32, i32
  }
}

</mosaic_0001>

<llo_original>
// kernel: tpu_custom_call.1
$region0: #{tpu_custom_call.1}
  #allocation0 [shape = 'u32[]', space=smem, size = 0x4, offset = 0x4, fixed_abs, tag = 'smem constant byte address 0x4 - core index']
  #allocation1 [shape = 'u32[144,128]{1,0:T(1,128)}', space=vmem, size = 0x12000, scoped, tag = 'internal scratch']
  %s0 = inlined_call_operand.hbm [shape: f32[2,4,4,128], index: 0, kind: input, shape index: {}]
  %s1 = inlined_call_operand.hbm [shape: s32[2,4,128], index: 1, kind: input, shape index: {}]
  %s2 = inlined_call_operand.hbm [shape: f32[2,1,3,4,128], index: 2, kind: output, shape index: {}]
  %s3 = sld [smem:[#allocation0]]
  $region53: #{tpu_custom_call.1} parent=0
    _
  %s5 = ssub.s32 1, %s3
  %s6 = scalar_select 0, %s5, %s3
  $region1: #{tpu_custom_call.1} parent=0
    #allocation2 [shape = 'u8[16384]{0}', space=vmem, size = 0x4000, scoped, tag = 'input window, operand 0']
    #allocation3 [shape = 's32[2]{0}', space=sflag, size = 0x8, scoped, tag = 'scoped memory for tpu_custom_call.1']
    #allocation4 [shape = 's32[2]{0}', space=sflag, size = 0x8, scoped, tag = 'scoped memory for tpu_custom_call.1']
    #allocation5 [shape = 'u8[4096]{0}', space=vmem, size = 0x1000, scoped, tag = 'input window, operand 1']
    #allocation6 [shape = 's32[2]{0}', space=sflag, size = 0x8, scoped, tag = 'scoped memory for tpu_custom_call.1']
    #allocation7 [shape = 'u8[12288]{0}', space=vmem, size = 0x3000, scoped, tag = 'output window, operand 0']
    %7 = vsyncpa [#allocation3], 0
    %s8 = scalar_lea.sflag [#allocation3], 1
    %9 = vsyncpa %s8, 0
    %10 = vsyncpa [#allocation6], 0
    %s11 = scalar_lea.sflag [#allocation6], 1
    %12 = vsyncpa %s11, 0
    %13 = vsyncpa [#allocation4], 0
    %s14 = scalar_lea.sflag [#allocation4], 1
    %15 = vsyncpa %s14, 0
    loop: start=0, step=1, limit=4
    $region2: #{tpu_custom_call.1} parent=1 // loop_pre_header
      _
    $region3: #{tpu_custom_call.1} parent=1 // loop_header
      %s17 = sphi 0, %s21
      %p18 = scmp.ge.s32.totalorder %s17, 4
      %s24 = sphi 0, %s43
      %s25 = sphi 0, %s39
      %s26 = sphi 0, %s35
      %s27 = sphi 0, %s24
      %s28 = sphi 0, %s25
      %s29 = sphi 0, %s26
      %s30 = sphi 0, %s27
      %s31 = sphi 0, %s28
      %s32 = sphi 0, %s29
      %s50 = sphi 0, %s52
      %s53 = sphi 0, %s50
      %s54 = sphi 0, %s53
      %s70 = sphi 0, %s54
      %s80 = sphi 0, %s82
      %s83 = sphi 0, %s80
      %s84 = sphi 0, %s83
      %s100 = sphi 0, %s84
      %s108 = sphi 0, %s110
      %s111 = sphi 0, %s108
      %s112 = sphi 0, %s111
      %s128 = sphi 0, %s112
    $region4: #{tpu_custom_call.1} parent=1 // loop_header_branch
      %20 = sbr.rel (%p18) target = $region8
    $region5: #{tpu_custom_call.1} parent=1 // loop_body
      %s22 = ssub.s32 %s17, 1
      %s23 = ssub.s32 %s17, 2
      %s33 = sadd.s32 1, %s26
      %p34 = scmp.ge.s32.totalorder %s33, 1
      %s35 = scalar_select %p34, 0, %s33
      %s36 = sadd.s32 1, %s25
      %s37 = scalar_select %p34, %s36, %s25
      %p38 = scmp.ge.s32.totalorder %s37, 1
      %s39 = scalar_select %p38, 0, %s37
      %s40 = sadd.s32 1, %s24
      %s41 = scalar_select %p38, %s40, %s24
      %p42 = scmp.ge.s32.totalorder %s41, 2
      %s43 = scalar_select %p42, 0, %s41
      %s44 = sadd.s32 %s25, %s26
      %s45 = sadd.s32 %s39, %s35
      %s46 = ssub.s32 %s24, %s43
      %s47 = ssub.s32 %s44, %s45
      %s48 = sor.u32 %s46, %s47
      %p49 = scmp.eq.s32.totalorder %s48, 0
      %s51 = sadd.s32 %s50, 1
      %s52 = scalar_select %p49, %s50, %s51
      %p55 = pneg %p49
      %p56 = scmp.eq.s32.totalorder %s17, 1
      %p57 = por %p55, %p56
      %p58 = scmp.ne.s32.totalorder %s50, %s53
      %p59 = scmp.eq.s32.totalorder %s17, 0
      %p60 = por %p58, %p59
      %p61 = scmp.ne.s32.totalorder %s50, %s53
      %p62 = scmp.eq.s32.totalorder %s22, 1
      %p63 = por %p61, %p62
      %p64 = scmp.ne.s32.totalorder %s53, %s54
      %p65 = scmp.eq.s32.totalorder %s22, 0
      %p66 = por %p64, %p65
      %p67 = scmp.ne.s32.totalorder %s53, %s54
      %p68 = scmp.eq.s32.totalorder %s23, 1
      %p69 = por %p67, %p68
      %p71 = scmp.ne.s32.totalorder %s54, %s70
      %p72 = scmp.eq.s32.totalorder %s23, 0
      %p73 = por %p71, %p72
      %s74 = sadd.s32 %s25, %s26
      %s75 = sadd.s32 %s39, %s35
      %s76 = ssub.s32 %s24, %s43
      %s77 = ssub.s32 %s74, %s75
      %s78 = sor.u32 %s76, %s77
      %p79 = scmp.eq.s32.totalorder %s78, 0
      %s81 = sadd.s32 %s80, 1
      %s82 = scalar_select %p79, %s80, %s81
      %p85 = pneg %p79
      %p86 = scmp.eq.s32.totalorder %s17, 1
      %p87 = por %p85, %p86
      %p88 = scmp.ne.s32.totalorder %s80, %s83
      %p89 = scmp.eq.s32.totalorder %s17, 0
      %p90 = por %p88, %p89
      %p91 = scmp.ne.s32.totalorder %s80, %s83
      %p92 = scmp.eq.s32.totalorder %s22, 1
      %p93 = por %p91, %p92
      %p94 = scmp.ne.s32.totalorder %s83, %s84
      %p95 = scmp.eq.s32.totalorder %s22, 0
      %p96 = por %p94, %p95
      %p97 = scmp.ne.s32.totalorder %s83, %s84
      %p98 = scmp.eq.s32.totalorder %s23, 1
      %p99 = por %p97, %p98
      %p101 = scmp.ne.s32.totalorder %s84, %s100
      %p102 = scmp.eq.s32.totalorder %s23, 0
      %p103 = por %p101, %p102
      %s104 = ssub.s32 %s24, %s43
      %s105 = ssub.s32 %s25, %s39
      %s106 = sor.u32 %s104, %s105
      %p107 = scmp.eq.s32.totalorder %s106, 0
      %s109 = sadd.s32 %s108, 1
      %s110 = scalar_select %p107, %s108, %s109
      %p113 = pneg %p107
      %p114 = scmp.eq.s32.totalorder %s17, 1
      %p115 = por %p113, %p114
      %p116 = scmp.ne.s32.totalorder %s108, %s111
      %p117 = scmp.eq.s32.totalorder %s17, 0
      %p118 = por %p116, %p117
      %p119 = scmp.ne.s32.totalorder %s108, %s111
      %p120 = scmp.eq.s32.totalorder %s22, 1
      %p121 = por %p119, %p120
      %p122 = scmp.ne.s32.totalorder %s111, %s112
      %p123 = scmp.eq.s32.totalorder %s22, 0
      %p124 = por %p122, %p123
      %p125 = scmp.ne.s32.totalorder %s111, %s112
      %p126 = scmp.eq.s32.totalorder %s23, 1
      %p127 = por %p125, %p126
      %p129 = scmp.ne.s32.totalorder %s112, %s128
      %p130 = scmp.eq.s32.totalorder %s23, 0
      %p131 = por %p129, %p130
      %p132 = scmp.le.s32.totalorder 1, %s17
      %p133 = scmp.lt.s32.totalorder %s17, 3
      %p134 = pnand %p132, %p133
      %p135 = pneg %p134
      // Predicated region
      $region9: #{tpu_custom_call.1} parent=5 // pred_check
        _
      $region10: #{tpu_custom_call.1} parent=5 // pred_check_branch
        %137 = sbr.rel (%p134) target = $region12
      $region11: #{tpu_custom_call.1} parent=5 // pred_region
        %s138 = ssub.s32 %s17, 1
      $region12: #{tpu_custom_call.1} parent=5 // pred_fallthru
        _
      %p139 = scmp.lt.s32.totalorder %s17, 2
      // Predicated region
      $region13: #{tpu_custom_call.1} parent=5 // pred_check
        %p140 = pneg %p139
      $region14: #{tpu_custom_call.1} parent=5 // pred_check_branch
        %142 = sbr.rel (%p140) target = $region16
      $region15: #{tpu_custom_call.1} parent=5 // pred_region
        // Predicated region
        $region17: #{tpu_custom_call.1} parent=15 // pred_check
          %p143 = pneg %p60
        $region18: #{tpu_custom_call.1} parent=15 // pred_check_branch
          %145 = sbr.rel (%p143) target = $region20
        $region19: #{tpu_custom_call.1} parent=15 // pred_region
          %s146 = sand.u32 %s50, 1
          %s147 = scalar_lea.sflag [#allocation3], %s146
          %s148 = sand.u32 %s50, 1
          %s149 = smul.addr %s148, 16
          %s150 = scalar_lea.vmem [#allocation2], %s149
          %s151 = sadd.s32 %s25, %s26
          %s153 = ssub.s32 256, 256
          %154 = vsyncadd %s147, %s153
          %s155 = smul.addr %s24, 4
          %s156 = sadd.s32 %s151, %s155
          %s157 = smul.addr %s156, 64
          %s158 = scalar_lea.hbm %s0, %s157
          %s159 = sshll.u32 %s150, 4
          %s160 = int_to_ptr.vmem [resolvable:$true] %s159
          %165 = dma.hbm_to_vmem [thread:$0]  %s158, 256, %s160, %s147, 64, 64, 4
        $region20: #{tpu_custom_call.1} parent=15 // pred_fallthru
          _
        // Predicated region
        $region21: #{tpu_custom_call.1} parent=15 // pred_check
          %p166 = pneg %p90
        $region22: #{tpu_custom_call.1} parent=15 // pred_check_branch
          %168 = sbr.rel (%p166) target = $region24
        $region23: #{tpu_custom_call.1} parent=15 // pred_region
          %s169 = sand.u32 %s80, 1
          %s170 = scalar_lea.sflag [#allocation6], %s169
          %s171 = sand.u32 %s80, 1
          %s172 = smul.addr %s171, 4
          %s173 = scalar_lea.vmem [#allocation5], %s172
          %s174 = sadd.s32 %s25, %s26
          %s176 = ssub.s32 64, 64
          %177 = vsyncadd %s170, %s176
          %s178 = sadd.s32 %s174, %s24
          %s179 = smul.addr %s178, 64
          %s180 = scalar_lea.hbm %s1, %s179
          %s182 = sshll.u32 %s173, 4
          %s183 = int_to_ptr.vmem [resolvable:$true] %s182
          %185 = dma.hbm_to_vmem [thread:$0]  %s180, 64, %s183, %s170
        $region24: #{tpu_custom_call.1} parent=15 // pred_fallthru
          _
      $region16: #{tpu_custom_call.1} parent=5 // pred_fallthru
        _
      %p186 = scmp.le.s32.totalorder 1, %s17
      %p187 = scmp.lt.s32.totalorder %s17, 3
      %p188 = pnand %p186, %p187
      %p189 = pneg %p188
      // Predicated region
      $region25: #{tpu_custom_call.1} parent=5 // pred_check
        _
      $region26: #{tpu_custom_call.1} parent=5 // pred_check_branch
        %191 = sbr.rel (%p188) target = $region28
      $region27: #{tpu_custom_call.1} parent=5 // pred_region
        %s192 = ssub.s32 %s17, 1
        %s193 = sand.u32 %s53, 1
        %s194 = scalar_lea.sflag [#allocation3], %s193
        %s195 = sand.u32 %s53, 1
        %s196 = smul.addr %s195, 16
        %s197 = scalar_lea.vmem [#allocation2], %s196
        // Predicated region
        $region29: #{tpu_custom_call.1} parent=27 // pred_check
          %p198 = pneg %p66
        $region30: #{tpu_custom_call.1} parent=27 // pred_check_branch
          %200 = sbr.rel (%p198) target = $region32
        $region31: #{tpu_custom_call.1} parent=27 // pred_region
          %201 = dma.done %s194, 256
        $region32: #{tpu_custom_call.1} parent=27 // pred_fallthru
          _
        %s202 = sand.u32 %s83, 1
        %s203 = scalar_lea.sflag [#allocation6], %s202
        %s204 = sand.u32 %s83, 1
        %s205 = smul.addr %s204, 4
        %s206 = scalar_lea.vmem [#allocation5], %s205
        // Predicated region
        $region33: #{tpu_custom_call.1} parent=27 // pred_check
          %p207 = pneg %p96
        $region34: #{tpu_custom_call.1} parent=27 // pred_check_branch
          %209 = sbr.rel (%p207) target = $region36
        $region35: #{tpu_custom_call.1} parent=27 // pred_region
          %210 = dma.done %s203, 64
        $region36: #{tpu_custom_call.1} parent=27 // pred_fallthru
          _
        %s211 = sand.u32 %s53, 1
        %s212 = scalar_lea.sflag [#allocation3], %s211
        %s213 = sand.u32 %s53, 1
        %s214 = smul.addr %s213, 16
        %s215 = scalar_lea.vmem [#allocation2], %s214
        %p216 = pneg %p66
        %p217 = pneg %p63
        %s218 = sand.u32 %s83, 1
        %s219 = scalar_lea.sflag [#allocation6], %s218
        %s220 = sand.u32 %s83, 1
        %s221 = smul.addr %s220, 4
        %s222 = scalar_lea.vmem [#allocation5], %s221
        %p223 = pneg %p96
        %p224 = pneg %p93
        %p225 = pneg %p124
        %p226 = pneg %p121
        %s227 = sand.u32 %s111, 1
        %s228 = scalar_lea.sflag [#allocation4], %s227
        %s229 = sand.u32 %s111, 1
        %s230 = smul.addr %s229, 12
        %s231 = scalar_lea.vmem [#allocation7], %s230
        %s232 = sadd.s32 %s28, %s29
        %s233 = sadd.s32 %s28, %s29
        %p234 = scmp.eq.s32.totalorder %s29, 0
        // Predicated region
        $region37: #{tpu_custom_call.1} parent=27 // pred_check
          %p235 = pneg %p234
        $region38: #{tpu_custom_call.1} parent=27 // pred_check_branch
          %237 = sbr.rel (%p235) target = $region40
        $region39: #{tpu_custom_call.1} parent=27 // pred_region
          %238 = vst [vmem:[%s231] sm:$0xf] 0.0
          %239 = vst [vmem:[%s231 + $0x4] sm:$0xf] 0.0
          %240 = vst [vmem:[%s231 + $0x8] sm:$0xf] 0.0
        $region40: #{tpu_custom_call.1} parent=27 // pred_fallthru
          _
        %v241 = vld [vmem:[%s197] sm:$0xf]
        %v242 = vld [vmem:[%s197 + $0x4] sm:$0xf]
        %v243 = vld [vmem:[%s197 + $0x8] sm:$0xf]
        %v244 = vld [vmem:[%s197 + $0xc] sm:$0xf]
        %v245 = vld [vmem:[%s206] sm:$0xf]
        %vm246 = vcmp.eq.s32.totalorder %v245, 0
        %vm247 = vcmp.eq.s32.totalorder %v245, 1
        %vm248 = vcmp.eq.s32.totalorder %v245, 2
        %vm249 = vcmp.eq.s32.totalorder %v245, 3
        %v250 = vld [vmem:[%s231] sm:$0xf]
        %v251 = vsel %vm246, %v241, 0.0
        %v252 = vsel %vm247, %v242, 0.0
        %v253 = vsel %vm248, %v243, 0.0
        %v254 = vsel %vm249, %v244, 0.0
        %vm255 = vcmask 1043456
        %v256 = vsel %vm255, %v251, 0.0
        %v257 = vrot.slane %v256, 4
        %v258 = vadd.f32 %v256, %v257
        %v259 = vrot.slane %v258, 2
        %v260 = vadd.f32 %v258, %v259
        %v261 = vrot.slane %v260, 1
        %v262 = vadd.f32 %v260, %v261
        %v263 = vsel %vm255, %v252, 0.0
        %v264 = vrot.slane %v263, 4
        %v265 = vadd.f32 %v263, %v264
        %v266 = vrot.slane %v265, 2
        %v267 = vadd.f32 %v265, %v266
        %v268 = vrot.slane %v267, 1
        %v269 = vadd.f32 %v267, %v268
        %v270 = vsel %vm255, %v253, 0.0
        %v271 = vrot.slane %v270, 4
        %v272 = vadd.f32 %v270, %v271
        %v273 = vrot.slane %v272, 2
        %v274 = vadd.f32 %v272, %v273
        %v275 = vrot.slane %v274, 1
        %v276 = vadd.f32 %v274, %v275
        %v277 = vsel %vm255, %v254, 0.0
        %v278 = vrot.slane %v277, 4
        %v279 = vadd.f32 %v277, %v278
        %v280 = vrot.slane %v279, 2
        %v281 = vadd.f32 %v279, %v280
        %v282 = vrot.slane %v281, 1
        %v283 = vadd.f32 %v281, %v282
        %vm288 = vcmask 1041409
        %v289 = vsel %vm288, %v269, %v262
        %vm290 = vcmask 1042434
        %v291 = vsel %vm290, %v276, %v289
        %vm292 = vcmask 1043459
        %v293 = vsel %vm292, %v283, %v291
        %v295 = vadd.f32 %v250, %v293
        %296 = vst [vmem:[%s231] sm:$0xf] %v295
        %s297 = scalar_lea.vmem %s231, 4 [#allocation7]
        %v298 = vld [vmem:[%s297] sm:$0xf]
        %v299 = vmul.f32 %v241, %v241
        %v300 = vmul.f32 %v242, %v242
        %v301 = vmul.f32 %v243, %v243
        %v302 = vmul.f32 %v244, %v244
        %v303 = vsel %vm255, %v299, 0.0
        %v304 = vrot.slane %v303, 4
        %v305 = vadd.f32 %v303, %v304
        %v306 = vrot.slane %v305, 2
        %v307 = vadd.f32 %v305, %v306
        %v308 = vrot.slane %v307, 1
        %v309 = vadd.f32 %v307, %v308
        %v310 = vsel %vm255, %v300, 0.0
        %v311 = vrot.slane %v310, 4
        %v312 = vadd.f32 %v310, %v311
        %v313 = vrot.slane %v312, 2
        %v314 = vadd.f32 %v312, %v313
        %v315 = vrot.slane %v314, 1
        %v316 = vadd.f32 %v314, %v315
        %v317 = vsel %vm255, %v301, 0.0
        %v318 = vrot.slane %v317, 4
        %v319 = vadd.f32 %v317, %v318
        %v320 = vrot.slane %v319, 2
        %v321 = vadd.f32 %v319, %v320
        %v322 = vrot.slane %v321, 1
        %v323 = vadd.f32 %v321, %v322
        %v324 = vsel %vm255, %v302, 0.0
        %v325 = vrot.slane %v324, 4
        %v326 = vadd.f32 %v324, %v325
        %v327 = vrot.slane %v326, 2
        %v328 = vadd.f32 %v326, %v327
        %v329 = vrot.slane %v328, 1
        %v330 = vadd.f32 %v328, %v329
        %v335 = vsel %vm288, %v316, %v309
        %v336 = vsel %vm290, %v323, %v335
        %v337 = vsel %vm292, %v330, %v336
        %v339 = vadd.f32 %v298, %v337
        %340 = vst [vmem:[%s297] sm:$0xf] %v339
        %s341 = scalar_lea.vmem %s231, 8 [#allocation7]
        %v342 = vld [vmem:[%s341] sm:$0xf]
        %v343 = vsel %vm246, 1.0, 0.0
        %v344 = vsel %vm247, 1.0, 0.0
        %v345 = vsel %vm248, 1.0, 0.0
        %v346 = vsel %vm249, 1.0, 0.0
        %v347 = vsel %vm255, %v343, 0.0
        %v348 = vrot.slane %v347, 4
        %v349 = vadd.f32 %v347, %v348
        %v350 = vrot.slane %v349, 2
        %v351 = vadd.f32 %v349, %v350
        %v352 = vrot.slane %v351, 1
        %v353 = vadd.f32 %v351, %v352
        %v354 = vsel %vm255, %v344, 0.0
        %v355 = vrot.slane %v354, 4
        %v356 = vadd.f32 %v354, %v355
        %v357 = vrot.slane %v356, 2
        %v358 = vadd.f32 %v356, %v357
        %v359 = vrot.slane %v358, 1
        %v360 = vadd.f32 %v358, %v359
        %v361 = vsel %vm255, %v345, 0.0
        %v362 = vrot.slane %v361, 4
        %v363 = vadd.f32 %v361, %v362
        %v364 = vrot.slane %v363, 2
        %v365 = vadd.f32 %v363, %v364
        %v366 = vrot.slane %v365, 1
        %v367 = vadd.f32 %v365, %v366
        %v368 = vsel %vm255, %v346, 0.0
        %v369 = vrot.slane %v368, 4
        %v370 = vadd.f32 %v368, %v369
        %v371 = vrot.slane %v370, 2
        %v372 = vadd.f32 %v370, %v371
        %v373 = vrot.slane %v372, 1
        %v374 = vadd.f32 %v372, %v373
        %v379 = vsel %vm288, %v360, %v353
        %v380 = vsel %vm290, %v367, %v379
        %v381 = vsel %vm292, %v374, %v380
        %v383 = vadd.f32 %v342, %v381
        %384 = vst [vmem:[%s341] sm:$0xf] %v383
        %s385 = sand.u32 %s111, 1
        %s386 = scalar_lea.sflag [#allocation4], %s385
        %s387 = sand.u32 %s111, 1
        %s388 = smul.addr %s387, 12
        %s389 = scalar_lea.vmem [#allocation7], %s388
        // Predicated region
        $region41: #{tpu_custom_call.1} parent=27 // pred_check
          %p390 = pneg %p121
        $region42: #{tpu_custom_call.1} parent=27 // pred_check_branch
          %392 = sbr.rel (%p390) target = $region44
        $region43: #{tpu_custom_call.1} parent=27 // pred_region
          %s394 = ssub.s32 192, 192
          %395 = vsyncadd %s386, %s394
          %s396 = smul.addr %s28, 3
          %s397 = smul.addr %s27, 3
          %s398 = sadd.s32 %s396, %s397
          %s399 = smul.addr %s398, 64
          %s400 = scalar_lea.hbm %s2, %s399
          %s401 = sshll.u32 %s389, 4
          %s402 = int_to_ptr.vmem [resolvable:$true] %s401
          %407 = dma.vmem_to_hbm [thread:$0]  %s402, 192, %s400, %s386, 64, 64, 4
        $region44: #{tpu_custom_call.1} parent=27 // pred_fallthru
          _
      $region28: #{tpu_custom_call.1} parent=5 // pred_fallthru
        _
      %p408 = scmp.le.s32.totalorder 2, %s17
      // Predicated region
      $region45: #{tpu_custom_call.1} parent=5 // pred_check
        %p409 = pneg %p408
      $region46: #{tpu_custom_call.1} parent=5 // pred_check_branch
        %411 = sbr.rel (%p409) target = $region48
      $region47: #{tpu_custom_call.1} parent=5 // pred_region
        %s412 = ssub.s32 %s17, 2
        // Predicated region
        $region49: #{tpu_custom_call.1} parent=47 // pred_check
          %p413 = pneg %p127
        $region50: #{tpu_custom_call.1} parent=47 // pred_check_branch
          %415 = sbr.rel (%p413) target = $region52
        $region51: #{tpu_custom_call.1} parent=47 // pred_region
          %s416 = sand.u32 %s112, 1
          %s417 = scalar_lea.sflag [#allocation4], %s416
          %s418 = sand.u32 %s112, 1
          %s419 = smul.addr %s418, 12
          %s420 = scalar_lea.vmem [#allocation7], %s419
          %421 = dma.done %s417, 192
        $region52: #{tpu_custom_call.1} parent=47 // pred_fallthru
          _
      $region48: #{tpu_custom_call.1} parent=5 // pred_fallthru
        _
    $region6: #{tpu_custom_call.1} parent=1 // loop_footer
      %s21 = sadd.s32 1, %s17
    $region7: #{tpu_custom_call.1} parent=1 // loop_footer_branch
      %16 = sbr.rel target = $region3
    $region8: #{tpu_custom_call.1} parent=1 // loop_exit
      _
    %422 = vsyncpa [#allocation3], 1
    %s423 = scalar_lea.sflag [#allocation3], 1
    %424 = vsyncpa %s423, 1
    %425 = vsyncpa [#allocation6], 1
    %s426 = scalar_lea.sflag [#allocation6], 1
    %427 = vsyncpa %s426, 1
    %428 = vsyncpa [#allocation4], 1
    %s429 = scalar_lea.sflag [#allocation4], 1
    %430 = vsyncpa %s429, 1

</llo_original>
